<compile_context>
chip_gen: v5e
topology: v5e:2x2
jax: 0.10.0
libtpu: 0.0.40
codegen_flags: <defaults>
</compile_context>

<pallas_src>
import jax
import jax.numpy as jnp
from jax.experimental import pallas as pl
from jax.experimental.pallas import tpu as pltpu

BN_EPS = 1e-5
NEG_SLOPE = 0.2


def _round_up(x, m):
    return (x + m - 1) // m * m


def _vmem_caps():
    """(tile working-set budget, vmem_limit_bytes), generation-aware."""
    cap = 64 * 1024 * 1024
    try:
        cap = int(pltpu.get_tpu_info().vmem_capacity_bytes)
    except Exception:
        pass
    if cap > 96 * 1024 * 1024:                       # 128 MiB parts: v5e / v6e
        return 64 * 1024 * 1024, 96 * 1024 * 1024
    return 24 * 1024 * 1024, 48 * 1024 * 1024        # v7x (64 MiB per core)


def _pick_tm(m, k_pad, f_pad, budget):
    """Largest multiple-of-8 row tile whose double-buffered pass-1 working set
    (P bf16 x2, W bf16 x2, Y bf16 x2 + small stats) fits the budget."""
    fixed = 2 * (k_pad * f_pad * 2) + 2 * 2 * (8 * f_pad * 4)
    per_row = 2 * (k_pad * 2) + 2 * (f_pad * 2)
    tm = (budget - fixed) // max(per_row, 1)
    tm = max(8, min(1024, (tm // 8) * 8))
    tm = min(tm, _round_up(m, 8))
    return tm


def _pick_ts(s, f_pad, fout, budget):
    """Spatial tile for the fused (transposing) pass 2.  Must divide s, be a
    multiple of 8, and be either a multiple of 128 or the full spatial size."""
    def fits(ts):
        need = 2 * ts * f_pad * 2 + 2 * fout * ts * 4 + 4 * f_pad * 4
        return need <= budget

    if s % 128 == 0:
        ts = s
        while ts >= 128:
            if s % ts == 0 and fits(ts):
                return ts
            ts -= 128
    if s % 8 == 0 and fits(s):
        return s
    return None


# --------------------------- Pass 1: matmul + per-channel stats ---------------

def matmul_stats_kernel(p_ref, w_ref, y_ref, sum_ref, sumsq_ref):
    i = pl.program_id(1)

    # Conv as matmul on the MXU: bf16 operands, f32 accumulate.
    y = jnp.dot(p_ref[...], w_ref[...], preferred_element_type=jnp.float32)
    # Y intermediate is stored in bf16 (halves pass-1 write + pass-2 read).
    y_ref[...] = y.astype(y_ref.dtype)

    # Per-channel partial statistics from the *f32* accumulate.  Zero-padded
    # rows of P produce exactly-zero rows of y so they contribute nothing; the
    # wrapper divides by the true row count M.  Keep an [8, F] sublane-group
    # partial (pure VPU adds, no cross-sublane reduce); wrapper finishes it.
    rows, f = y.shape
    yg = y.reshape(rows // 8, 8, f)

    @pl.when(i == 0)
    def _():
        sum_ref[...] = jnp.zeros_like(sum_ref)
        sumsq_ref[...] = jnp.zeros_like(sumsq_ref)

    sum_ref[...] += jnp.sum(yg, axis=0)
    sumsq_ref[...] += jnp.sum(yg * yg, axis=0)


# --------------------------- Pass 2: BN affine + LeakyReLU --------------------

def bn_act_transpose_kernel(y_ref, scale_ref, shift_ref, o_ref):
    # scale = gamma * rsqrt(var + eps); shift = beta - mean * scale (precomputed)
    z = y_ref[...].astype(jnp.float32) * scale_ref[...] + shift_ref[...]
    z = jnp.where(z >= 0, z, NEG_SLOPE * z)
    zt = z.T                                   # [f_pad, ts] via XLU transpose
    o_ref[0] = zt[: o_ref.shape[1], :]         # drop padded channels on store


def bn_act_kernel(y_ref, scale_ref, shift_ref, o_ref):
    z = y_ref[...].astype(jnp.float32) * scale_ref[...] + shift_ref[...]
    o_ref[...] = jnp.where(z >= 0, z, NEG_SLOPE * z)


# --------------------------- Wrapper ------------------------------------------

def conv_block_forward(x, weight, gamma, beta):
    """x: [N, fin, H, W] (NCHW). weight: [fout, fin, 4, 4]. Returns NCHW output."""
    n, fin, h, w = x.shape
    fout = weight.shape[0]
    k, stride, pad = 4, 2, 1
    ho = (h + 2 * pad - k) // stride + 1
    wo = (w + 2 * pad - k) // stride + 1
    s = ho * wo
    m = n * s
    kdim = fin * k * k

    tile_budget, vmem_limit = _vmem_caps()

    # Patch extraction via grouped identity conv (no slow gather), produced in
    # bf16 at the source.  Feature ordering is (c, kh, kw), matching PyTorch's
    # weight flattening.
    patches = jax.lax.conv_general_dilated_patches(
        x.astype(jnp.bfloat16), filter_shape=(k, k),
        window_strides=(stride, stride),
        padding=((pad, pad), (pad, pad)),
        dimension_numbers=("NCHW", "OIHW", "NHWC"))     # [N, Ho, Wo, fin*k*k] bf16
    patches = patches.reshape(m, kdim)
    wmat = weight.reshape(fout, kdim).T.astype(jnp.bfloat16)   # [kdim, fout]

    # MXU / lane-dense padding and tiling.
    k_pad = _round_up(kdim, 128)
    f_pad = _round_up(fout, 128)
    tm = _pick_tm(m, k_pad, f_pad, tile_budget)
    nm_total = -(-m // tm)
    nc = 2 if nm_total >= 2 else 1                # megacore split of the row axis
    nm_total = _round_up(nm_total, nc)
    nm_half = nm_total // nc
    m_pad = nm_total * tm

    p_pad = jnp.pad(patches, ((0, m_pad - m), (0, k_pad - kdim)))
    w_pad = jnp.pad(wmat, ((0, k_pad - kdim), (0, f_pad - fout)))

    # ---- Pass 1: Y tiles (bf16) + per-core per-channel sum / sumsq -------------
    y_flat, psum, psumsq = pl.pallas_call(
        matmul_stats_kernel,
        out_shape=(
            jax.ShapeDtypeStruct((m_pad, f_pad), jnp.bfloat16),
            jax.ShapeDtypeStruct((nc * 8, f_pad), jnp.float32),
            jax.ShapeDtypeStruct((nc * 8, f_pad), jnp.float32),
        ),
        grid=(nc, nm_half),
        in_specs=[
            pl.BlockSpec((tm, k_pad), lambda c, i: (c * nm_half + i, 0)),
            pl.BlockSpec((k_pad, f_pad), lambda c, i: (0, 0)),
        ],
        out_specs=(
            pl.BlockSpec((tm, f_pad), lambda c, i: (c * nm_half + i, 0)),
            pl.BlockSpec((8, f_pad), lambda c, i: (c, 0)),   # per-core accumulator
            pl.BlockSpec((8, f_pad), lambda c, i: (c, 0)),   # per-core accumulator
        ),
        compiler_params=pltpu.CompilerParams(
            dimension_semantics=("parallel", "arbitrary"),
            vmem_limit_bytes=vmem_limit),
        cost_estimate=pl.CostEstimate(
            flops=2 * m_pad * k_pad * f_pad,
            transcendentals=0,
            bytes_accessed=(p_pad.size * 2 + w_pad.size * 2
                            + m_pad * f_pad * 2 + 2 * nc * 8 * f_pad * 4)),
    )(p_pad, w_pad)

    # ---- Finalize BN statistics (tiny, f32, plain JAX) -------------------------
    mean = psum.sum(axis=0) / m
    var = jnp.maximum(psumsq.sum(axis=0) / m - mean * mean, 0.0)
    gamma_p = jnp.pad(gamma.astype(jnp.float32), (0, f_pad - fout))
    beta_p = jnp.pad(beta.astype(jnp.float32), (0, f_pad - fout))
    scale_v = gamma_p * jax.lax.rsqrt(var + BN_EPS)
    shift_v = beta_p - mean * scale_v
    scale = scale_v.reshape(1, f_pad)
    shift = shift_v.reshape(1, f_pad)

    # ---- Pass 2: normalize + affine + LeakyReLU (+ fused NCHW layout) ----------
    ts = _pick_ts(s, f_pad, fout, tile_budget)
    if ts is not None:
        ns = s // ts
        out3 = pl.pallas_call(
            bn_act_transpose_kernel,
            out_shape=jax.ShapeDtypeStruct((n, fout, s), jnp.float32),
            grid=(n, ns),
            in_specs=[
                pl.BlockSpec((ts, f_pad), lambda b, j: (b * ns + j, 0)),
                pl.BlockSpec((1, f_pad), lambda b, j: (0, 0)),
                pl.BlockSpec((1, f_pad), lambda b, j: (0, 0)),
            ],
            out_specs=pl.BlockSpec((1, fout, ts), lambda b, j: (b, 0, j)),
            compiler_params=pltpu.CompilerParams(
                dimension_semantics=("parallel", "parallel"),
                vmem_limit_bytes=vmem_limit),
            cost_estimate=pl.CostEstimate(
                flops=4 * n * s * f_pad,
                transcendentals=0,
                bytes_accessed=n * s * f_pad * 2 + n * fout * s * 4),
        )(y_flat, scale, shift)
        return out3.reshape(n, fout, ho, wo)          # free reshape, no transpose

    # Fallback (rare: spatial size not a multiple of 8): flat elementwise pass
    # followed by an XLA slice+transpose.
    nm2 = m_pad // tm
    out_flat = pl.pallas_call(
        bn_act_kernel,
        out_shape=jax.ShapeDtypeStruct((m_pad, f_pad), jnp.float32),
        grid=(nm2,),
        in_specs=[
            pl.BlockSpec((tm, f_pad), lambda i: (i, 0)),
            pl.BlockSpec((1, f_pad), lambda i: (0, 0)),
            pl.BlockSpec((1, f_pad), lambda i: (0, 0)),
        ],
        out_specs=pl.BlockSpec((tm, f_pad), lambda i: (i, 0)),
        compiler_params=pltpu.CompilerParams(
            dimension_semantics=("parallel",),
            vmem_limit_bytes=vmem_limit),
        cost_estimate=pl.CostEstimate(
            flops=4 * m_pad * f_pad, transcendentals=0,
            bytes_accessed=m_pad * f_pad * 2 + m_pad * f_pad * 4),
    )(y_flat, scale, shift)
    return out_flat[:m, :fout].reshape(n, ho, wo, fout).transpose(0, 3, 1, 2)


def reference_forward(x, weight, gamma, beta):
    """Pure-JAX f32 reference matching PyTorch ConvBlock (training-mode BN)."""
    y = jax.lax.conv_general_dilated(
        x, weight, window_strides=(2, 2), padding=((1, 1), (1, 1)),
        dimension_numbers=("NCHW", "OIHW", "NCHW"))
    mean = jnp.mean(y, axis=(0, 2, 3), keepdims=True)
    var = jnp.mean((y - mean) ** 2, axis=(0, 2, 3), keepdims=True)
    y_hat = (y - mean) / jnp.sqrt(var + BN_EPS)
    z = gamma[None, :, None, None] * y_hat + beta[None, :, None, None]
    return jnp.where(z >= 0, z, NEG_SLOPE * z)


if __name__ == "__main__":
    # Small shapes: batch=2, fin=4, spatial=16x16, fout=8 -> output [2, 8, 8, 8]
    N, FIN, H, W = 2, 4, 16, 16
    FOUT = 8

    key = jax.random.PRNGKey(0)
    kx, kw, kg, kb = jax.random.split(key, 4)
    x = jax.random.normal(kx, (N, FIN, H, W), dtype=jnp.float32)
    weight = jax.random.normal(kw, (FOUT, FIN, 4, 4), dtype=jnp.float32) * 0.1
    gamma = 1.0 + 0.1 * jax.random.normal(kg, (FOUT,), dtype=jnp.float32)
    beta = 0.1 * jax.random.normal(kb, (FOUT,), dtype=jnp.float32)

    out = jax.block_until_ready(conv_block_forward(x, weight, gamma, beta))

    ref = reference_forward(x, weight, gamma, beta)
    assert out.shape == (N, FOUT, H // 2, W // 2), out.shape
    # bf16 MXU operands + bf16 Y intermediate vs f32 reference -> loose tolerance.
    max_err = float(jnp.max(jnp.abs(out - ref)))
    assert jnp.allclose(out, ref, atol=8e-2, rtol=5e-2), max_err

    print("KERNEL_OK")
</pallas_src>

<mosaic_0001>
module attributes {stable_mosaic.version = 11 : i64} {
  func.func @matmul_stats_kernel(%arg0: i32, %arg1: i32, %arg2: memref<128x128xbf16, #tpu.memory_space<vmem>>, %arg3: memref<128x128xbf16, #tpu.memory_space<vmem>>, %arg4: memref<128x128xbf16, #tpu.memory_space<vmem>>, %arg5: memref<8x128xf32, #tpu.memory_space<vmem>>, %arg6: memref<8x128xf32, #tpu.memory_space<vmem>>) attributes {dimension_semantics = [#tpu.dimension_semantics<parallel>, #tpu.dimension_semantics<arbitrary>], iteration_bounds = array<i64: 1, 1>, scalar_prefetch = 0 : i64, scratch_operands = 0 : i64, tpu.core_type = #tpu.core_type<tc>, window_params = [{transform_indices = @transform_0, window_bounds = array<i64: 128, 128>}, {pipeline_mode = #tpu.pipeline_mode<synchronous>, transform_indices = @transform_1, window_bounds = array<i64: 128, 128>}, {transform_indices = @transform_2, window_bounds = array<i64: 128, 128>}, {transform_indices = @transform_3, window_bounds = array<i64: 8, 128>}, {transform_indices = @transform_4, window_bounds = array<i64: 8, 128>}]} {
    %c0 = arith.constant 0 : index
    %c0_0 = arith.constant 0 : index
    %0 = vector.load %arg2[%c0, %c0_0] : memref<128x128xbf16, #tpu.memory_space<vmem>>, vector<128x128xbf16>
    %c0_1 = arith.constant 0 : index
    %c0_2 = arith.constant 0 : index
    %1 = vector.load %arg3[%c0_1, %c0_2] : memref<128x128xbf16, #tpu.memory_space<vmem>>, vector<128x128xbf16>
    %cst = arith.constant dense<0.000000e+00> : vector<128x128xf32>
    %2 = tpu.matmul %0, %1, %cst {dimension_numbers = #tpu.dot_dimension_numbers<[1], [0], [0], [1], [0, 0, 1, 1], [], []>} : vector<128x128xbf16>, vector<128x128xbf16>, vector<128x128xf32> -> vector<128x128xf32>
    %3 = arith.truncf %2 : vector<128x128xf32> to vector<128x128xbf16>
    %c0_3 = arith.constant 0 : index
    %c0_4 = arith.constant 0 : index
    %4 = vector.load %arg4[%c0_3, %c0_4] : memref<128x128xbf16, #tpu.memory_space<vmem>>, vector<128x128xbf16>
    tpu.vector_store %arg4[%c0_3, %c0_4], %3 {strides = array<i32>} : memref<128x128xbf16, #tpu.memory_space<vmem>>, vector<128x128xbf16>,
    %5 = vector.shape_cast %2 : vector<128x128xf32> to vector<16x8x128xf32>
    %c0_i32 = arith.constant 0 : i32
    %6 = arith.cmpi eq, %arg1, %c0_i32 : i32
    %7 = arith.extui %6 : i1 to i32
    %c0_i32_5 = arith.constant 0 : i32
    %8 = arith.cmpi ne, %7, %c0_i32_5 : i32
    scf.if %8 {
      %cst_16 = arith.constant 0.000000e+00 : f32
      %18 = vector.broadcast %cst_16 : f32 to vector<8x128xf32>
      %c0_17 = arith.constant 0 : index
      %c0_18 = arith.constant 0 : index
      %19 = vector.load %arg5[%c0_17, %c0_18] : memref<8x128xf32, #tpu.memory_space<vmem>>, vector<8x128xf32>
      tpu.vector_store %arg5[%c0_17, %c0_18], %18 {strides = array<i32>} : memref<8x128xf32, #tpu.memory_space<vmem>>, vector<8x128xf32>,
      %cst_19 = arith.constant 0.000000e+00 : f32
      %20 = vector.broadcast %cst_19 : f32 to vector<8x128xf32>
      %c0_20 = arith.constant 0 : index
      %c0_21 = arith.constant 0 : index
      %21 = vector.load %arg6[%c0_20, %c0_21] : memref<8x128xf32, #tpu.memory_space<vmem>>, vector<8x128xf32>
      tpu.vector_store %arg6[%c0_20, %c0_21], %20 {strides = array<i32>} : memref<8x128xf32, #tpu.memory_space<vmem>>, vector<8x128xf32>,
    } else {
    }
    %c0_6 = arith.constant 0 : index
    %c0_7 = arith.constant 0 : index
    %9 = vector.load %arg5[%c0_6, %c0_7] : memref<8x128xf32, #tpu.memory_space<vmem>>, vector<8x128xf32>
    %cst_8 = arith.constant dense<0.000000e+00> : vector<8x128xf32>
    %10 = vector.multi_reduction <add>, %5, %cst_8 [0] : vector<16x8x128xf32> to vector<8x128xf32>
    %11 = arith.addf %9, %10 : vector<8x128xf32>
    %c0_9 = arith.constant 0 : index
    %c0_10 = arith.constant 0 : index
    %12 = vector.load %arg5[%c0_9, %c0_10] : memref<8x128xf32, #tpu.memory_space<vmem>>, vector<8x128xf32>
    tpu.vector_store %arg5[%c0_9, %c0_10], %11 {strides = array<i32>} : memref<8x128xf32, #tpu.memory_space<vmem>>, vector<8x128xf32>,
    %c0_11 = arith.constant 0 : index
    %c0_12 = arith.constant 0 : index
    %13 = vector.load %arg6[%c0_11, %c0_12] : memref<8x128xf32, #tpu.memory_space<vmem>>, vector<8x128xf32>
    %14 = arith.mulf %5, %5 : vector<16x8x128xf32>
    %cst_13 = arith.constant dense<0.000000e+00> : vector<8x128xf32>
    %15 = vector.multi_reduction <add>, %14, %cst_13 [0] : vector<16x8x128xf32> to vector<8x128xf32>
    %16 = arith.addf %13, %15 : vector<8x128xf32>
    %c0_14 = arith.constant 0 : index
    %c0_15 = arith.constant 0 : index
    %17 = vector.load %arg6[%c0_14, %c0_15] : memref<8x128xf32, #tpu.memory_space<vmem>>, vector<8x128xf32>
    tpu.vector_store %arg6[%c0_14, %c0_15], %16 {strides = array<i32>} : memref<8x128xf32, #tpu.memory_space<vmem>>, vector<8x128xf32>,
    return
  }
  func.func @transform_0(%arg0: i32, %arg1: i32) -> (i32, i32) {
    %c1_i32 = arith.constant 1 : i32
    %0 = arith.muli %arg0, %c1_i32 : i32
    %1 = arith.addi %0, %arg1 : i32
    %c0_i32 = arith.constant 0 : i32
    %c0_i32_0 = arith.constant 0 : i32
    return %1, %c0_i32 : i32, i32
  }
  func.func @transform_1(%arg0: i32, %arg1: i32) -> (i32, i32) {
    %c0_i32 = arith.constant 0 : i32
    %c0_i32_0 = arith.constant 0 : i32
    %c0_i32_1 = arith.constant 0 : i32
    return %c0_i32, %c0_i32_0 : i32, i32
  }
  func.func @transform_2(%arg0: i32, %arg1: i32) -> (i32, i32) {
    %c1_i32 = arith.constant 1 : i32
    %0 = arith.muli %arg0, %c1_i32 : i32
    %1 = arith.addi %0, %arg1 : i32
    %c0_i32 = arith.constant 0 : i32
    %c0_i32_0 = arith.constant 0 : i32
    return %1, %c0_i32 : i32, i32
  }
  func.func @transform_3(%arg0: i32, %arg1: i32) -> (i32, i32) {
    %c0_i32 = arith.constant 0 : i32
    %c0_i32_0 = arith.constant 0 : i32
    return %arg0, %c0_i32 : i32, i32
  }
  func.func @transform_4(%arg0: i32, %arg1: i32) -> (i32, i32) {
    %c0_i32 = arith.constant 0 : i32
    %c0_i32_0 = arith.constant 0 : i32
    return %arg0, %c0_i32 : i32, i32
  }
}

</mosaic_0001>

<llo_original>
// kernel: tpu_custom_call.1
$region0: #{tpu_custom_call.1}
  #allocation0 [shape = 'u32[]', space=smem, size = 0x4, offset = 0x4, fixed_abs, tag = 'smem constant byte address 0x4 - core index']
  #allocation1 [shape = 'u32[72,128]{1,0:T(1,128)}', space=vmem, size = 0x9000, scoped, tag = 'internal scratch']
  %s0 = inlined_call_operand.hbm [shape: bf16[128,128], index: 0, kind: input, shape index: {}]
  %s1 = inlined_call_operand.hbm [shape: bf16[128,128], index: 1, kind: input, shape index: {}]
  %s2 = inlined_call_operand.hbm [shape: bf16[128,128], index: 2, kind: output, shape index: {0}]
  %s3 = inlined_call_operand.hbm [shape: f32[8,128], index: 3, kind: output, shape index: {1}]
  %s4 = inlined_call_operand.hbm [shape: f32[8,128], index: 4, kind: output, shape index: {2}]
  %5 = xla_tuple %s2, %s3, %s4
  %s6 = sld [smem:[#allocation0]]
  $region46: #{tpu_custom_call.1} parent=0
    _
  %s8 = ssub.s32 1, %s6
  %s9 = scalar_select 0, %s8, %s6
  $region1: #{tpu_custom_call.1} parent=0
    #allocation2 [shape = 'u8[32768]{0}', space=vmem, size = 0x8000, scoped, tag = 'input window, operand 0, single buffered']
    #allocation3 [shape = 's32[1]{0}', space=sflag, size = 0x4, scoped, tag = 'scoped memory for tpu_custom_call.1']
    #allocation4 [shape = 's32[1]{0}', space=sflag, size = 0x4, scoped, tag = 'scoped memory for tpu_custom_call.1']
    #allocation5 [shape = 'u8[32768]{0}', space=vmem, size = 0x8000, scoped, tag = 'input window, operand 1, single buffered']
    #allocation6 [shape = 's32[1]{0}', space=sflag, size = 0x4, scoped, tag = 'scoped memory for tpu_custom_call.1']
    #allocation7 [shape = 'u8[32768]{0}', space=vmem, size = 0x8000, scoped, tag = 'output window, operand 0, single buffered']
    #allocation8 [shape = 'u8[4096]{0}', space=vmem, size = 0x1000, scoped, tag = 'output window, operand 1, single buffered']
    #allocation9 [shape = 's32[1]{0}', space=sflag, size = 0x4, scoped, tag = 'scoped memory for tpu_custom_call.1']
    #allocation10 [shape = 'u8[4096]{0}', space=vmem, size = 0x1000, scoped, tag = 'output window, operand 2, single buffered']
    %10 = vsyncpa [#allocation3], 0
    %11 = vsyncpa [#allocation6], 0
    %12 = vsyncpa [#allocation4], 0
    %13 = vsyncpa [#allocation9], 0
    // Predicated region
    $region2: #{tpu_custom_call.1} parent=1 // pred_check
      _
    $region3: #{tpu_custom_call.1} parent=1 // pred_check_branch
      %15 = sbr.rel (0) target = $region5
    $region4: #{tpu_custom_call.1} parent=1 // pred_region
      %s16 = sadd.s32 0, 0
      %s17 = smul.u32 16, %s16
      %19 = vsyncadd [#allocation3], 0
      %s20 = smul.addr %s17, 4
      %s21 = scalar_lea.hbm %s0, %s20
      %s22 = sshll.u32 %s21, 4
      %s23 = int_to_ptr.hbm [resolvable:$true] %s22
      %s24 = sshll.u32 [#allocation2], 4
      %s25 = int_to_ptr.vmem [resolvable:$true] %s24
      %30 = dma.hbm_to_vmem [thread:$0]  %s23, 1024, %s25, [#allocation3], 64, 64, 4
    $region5: #{tpu_custom_call.1} parent=1 // pred_fallthru
      _
    // Predicated region
    $region6: #{tpu_custom_call.1} parent=1 // pred_check
      _
    $region7: #{tpu_custom_call.1} parent=1 // pred_check_branch
      %32 = sbr.rel (0) target = $region9
    $region8: #{tpu_custom_call.1} parent=1 // pred_region
      %34 = vsyncadd [#allocation6], 0
      %s35 = sshll.u32 %s1, 4
      %s36 = int_to_ptr.hbm [resolvable:$true] %s35
      %s37 = sshll.u32 [#allocation5], 4
      %s38 = int_to_ptr.vmem [resolvable:$true] %s37
      %43 = dma.hbm_to_vmem [thread:$0]  %s36, 1024, %s38, [#allocation6], 64, 64, 4
    $region9: #{tpu_custom_call.1} parent=1 // pred_fallthru
      _
    // Predicated region
    $region10: #{tpu_custom_call.1} parent=1 // pred_check
      _
    $region11: #{tpu_custom_call.1} parent=1 // pred_check_branch
      %45 = sbr.rel (0) target = $region13
    $region12: #{tpu_custom_call.1} parent=1 // pred_region
      %47 = dma.done [#allocation3], 1024
    $region13: #{tpu_custom_call.1} parent=1 // pred_fallthru
      _
    // Predicated region
    $region14: #{tpu_custom_call.1} parent=1 // pred_check
      _
    $region15: #{tpu_custom_call.1} parent=1 // pred_check_branch
      %49 = sbr.rel (0) target = $region17
    $region16: #{tpu_custom_call.1} parent=1 // pred_region
      %51 = dma.done [#allocation6], 1024
    $region17: #{tpu_custom_call.1} parent=1 // pred_fallthru
      _
    %s52 = sadd.s32 0, 0
    %s53 = smul.u32 16, %s52
    %s54 = sadd.s32 0, 0
    %s55 = smul.u32 16, %s54
    %v56 = vld [vmem:[#allocation2] sm:$0xf]
    %v57 = vld [vmem:[#allocation2 + $0x4] sm:$0xf]
    %v58 = vld [vmem:[#allocation2 + $0x8] sm:$0xf]
    %v59 = vld [vmem:[#allocation2 + $0xc] sm:$0xf]
    %v60 = vld [vmem:[#allocation2 + $0x10] sm:$0xf]
    %v61 = vld [vmem:[#allocation2 + $0x14] sm:$0xf]
    %v62 = vld [vmem:[#allocation2 + $0x18] sm:$0xf]
    %v63 = vld [vmem:[#allocation2 + $0x1c] sm:$0xf]
    %v64 = vld [vmem:[#allocation2 + $0x20] sm:$0xf]
    %v65 = vld [vmem:[#allocation2 + $0x24] sm:$0xf]
    %v66 = vld [vmem:[#allocation2 + $0x28] sm:$0xf]
    %v67 = vld [vmem:[#allocation2 + $0x2c] sm:$0xf]
    %v68 = vld [vmem:[#allocation2 + $0x30] sm:$0xf]
    %v69 = vld [vmem:[#allocation2 + $0x34] sm:$0xf]
    %v70 = vld [vmem:[#allocation2 + $0x38] sm:$0xf]
    %v71 = vld [vmem:[#allocation2 + $0x3c] sm:$0xf]
    %v72 = vld [vmem:[#allocation5] sm:$0xf]
    %v73 = vld [vmem:[#allocation5 + $0x4] sm:$0xf]
    %v74 = vld [vmem:[#allocation5 + $0x8] sm:$0xf]
    %v75 = vld [vmem:[#allocation5 + $0xc] sm:$0xf]
    %v76 = vld [vmem:[#allocation5 + $0x10] sm:$0xf]
    %v77 = vld [vmem:[#allocation5 + $0x14] sm:$0xf]
    %v78 = vld [vmem:[#allocation5 + $0x18] sm:$0xf]
    %v79 = vld [vmem:[#allocation5 + $0x1c] sm:$0xf]
    %v80 = vld [vmem:[#allocation5 + $0x20] sm:$0xf]
    %v81 = vld [vmem:[#allocation5 + $0x24] sm:$0xf]
    %v82 = vld [vmem:[#allocation5 + $0x28] sm:$0xf]
    %v83 = vld [vmem:[#allocation5 + $0x2c] sm:$0xf]
    %v84 = vld [vmem:[#allocation5 + $0x30] sm:$0xf]
    %v85 = vld [vmem:[#allocation5 + $0x34] sm:$0xf]
    %v86 = vld [vmem:[#allocation5 + $0x38] sm:$0xf]
    %v87 = vld [vmem:[#allocation5 + $0x3c] sm:$0xf]
    %v104 = vunpack.c.l.b16 %v56
    %v105 = vunpack.c.l.b16 %v57
    %v106 = vunpack.c.l.b16 %v58
    %v107 = vunpack.c.l.b16 %v59
    %v108 = vunpack.c.l.b16 %v60
    %v109 = vunpack.c.l.b16 %v61
    %v110 = vunpack.c.l.b16 %v62
    %v111 = vunpack.c.l.b16 %v63
    %v112 = vunpack.c.l.b16 %v64
    %v113 = vunpack.c.l.b16 %v65
    %v114 = vunpack.c.l.b16 %v66
    %v115 = vunpack.c.l.b16 %v67
    %v116 = vunpack.c.l.b16 %v68
    %v117 = vunpack.c.l.b16 %v69
    %v118 = vunpack.c.l.b16 %v70
    %v119 = vunpack.c.l.b16 %v71
    %v120 = vpack.c.b16 %v105, %v104
    %v121 = vpack.c.b16 %v107, %v106
    %v122 = vpack.c.b16 %v109, %v108
    %v123 = vpack.c.b16 %v111, %v110
    %v124 = vpack.c.b16 %v113, %v112
    %v125 = vpack.c.b16 %v115, %v114
    %v126 = vpack.c.b16 %v117, %v116
    %v127 = vpack.c.b16 %v119, %v118
    %v152 = vunpack.c.l.b16 %v72
    %v153 = vunpack.c.l.b16 %v73
    %v154 = vunpack.c.l.b16 %v74
    %v155 = vunpack.c.l.b16 %v75
    %v156 = vunpack.c.l.b16 %v76
    %v157 = vunpack.c.l.b16 %v77
    %v158 = vunpack.c.l.b16 %v78
    %v159 = vunpack.c.l.b16 %v79
    %v160 = vunpack.c.l.b16 %v80
    %v161 = vunpack.c.l.b16 %v81
    %v162 = vunpack.c.l.b16 %v82
    %v163 = vunpack.c.l.b16 %v83
    %v164 = vunpack.c.l.b16 %v84
    %v165 = vunpack.c.l.b16 %v85
    %v166 = vunpack.c.l.b16 %v86
    %v167 = vunpack.c.l.b16 %v87
    %v168 = vpack.c.b16 %v153, %v152
    %v169 = vpack.c.b16 %v155, %v154
    %v170 = vpack.c.b16 %v157, %v156
    %v171 = vpack.c.b16 %v159, %v158
    %v172 = vpack.c.b16 %v161, %v160
    %v173 = vpack.c.b16 %v163, %v162
    %v174 = vpack.c.b16 %v165, %v164
    %v175 = vpack.c.b16 %v167, %v166
    %184 = vmatpush.bf16.msra.mxu0 %v175
    %185 = vmatpush.bf16.msra.mxu0 %v174
    %186 = vmatpush.bf16.msra.mxu0 %v173
    %187 = vmatpush.bf16.msra.mxu0 %v172
    %188 = vmatpush.bf16.msra.mxu0 %v171
    %189 = vmatpush.bf16.msra.mxu0 %v170
    %190 = vmatpush.bf16.msra.mxu0 %v169
    %191 = vmatpush.bf16.msra.mxu0 %v168
    %192 = vmatmul.bf16.gmra.mxu0 %v120
    %v193 = vpop.f32.mrf.mxu0
    %v194 = vadd.f32 0.0, %v193
    %v195 = vpop.f32.mrf.mxu0
    %v196 = vadd.f32 0.0, %v195
    %197 = vmatmul.bf16.gmra.mxu0 %v121
    %v198 = vpop.f32.mrf.mxu0
    %v199 = vadd.f32 0.0, %v198
    %v200 = vpop.f32.mrf.mxu0
    %v201 = vadd.f32 0.0, %v200
    %202 = vmatmul.bf16.gmra.mxu0 %v122
    %v203 = vpop.f32.mrf.mxu0
    %v204 = vadd.f32 0.0, %v203
    %v205 = vpop.f32.mrf.mxu0
    %v206 = vadd.f32 0.0, %v205
    %207 = vmatmul.bf16.gmra.mxu0 %v123
    %v208 = vpop.f32.mrf.mxu0
    %v209 = vadd.f32 0.0, %v208
    %v210 = vpop.f32.mrf.mxu0
    %v211 = vadd.f32 0.0, %v210
    %212 = vmatmul.bf16.gmra.mxu0 %v124
    %v213 = vpop.f32.mrf.mxu0
    %v214 = vadd.f32 0.0, %v213
    %v215 = vpop.f32.mrf.mxu0
    %v216 = vadd.f32 0.0, %v215
    %217 = vmatmul.bf16.gmra.mxu0 %v125
    %v218 = vpop.f32.mrf.mxu0
    %v219 = vadd.f32 0.0, %v218
    %v220 = vpop.f32.mrf.mxu0
    %v221 = vadd.f32 0.0, %v220
    %222 = vmatmul.bf16.gmra.mxu0 %v126
    %v223 = vpop.f32.mrf.mxu0
    %v224 = vadd.f32 0.0, %v223
    %v225 = vpop.f32.mrf.mxu0
    %v226 = vadd.f32 0.0, %v225
    %227 = vmatmul.bf16.gmra.mxu0 %v127
    %v228 = vpop.f32.mrf.mxu0
    %v229 = vadd.f32 0.0, %v228
    %v230 = vpop.f32.mrf.mxu0
    %v231 = vadd.f32 0.0, %v230
    %232 = vdwg.mxu0
    %v233 = vpack.c.bf16 %v194, %v194
    %v234 = vpack.c.bf16 %v196, %v196
    %v235 = vpack.c.bf16 %v199, %v199
    %v236 = vpack.c.bf16 %v201, %v201
    %v237 = vpack.c.bf16 %v204, %v204
    %v238 = vpack.c.bf16 %v206, %v206
    %v239 = vpack.c.bf16 %v209, %v209
    %v240 = vpack.c.bf16 %v211, %v211
    %v241 = vpack.c.bf16 %v214, %v214
    %v242 = vpack.c.bf16 %v216, %v216
    %v243 = vpack.c.bf16 %v219, %v219
    %v244 = vpack.c.bf16 %v221, %v221
    %v245 = vpack.c.bf16 %v224, %v224
    %v246 = vpack.c.bf16 %v226, %v226
    %v247 = vpack.c.bf16 %v229, %v229
    %v248 = vpack.c.bf16 %v231, %v231
    %249 = vst [vmem:[#allocation7] sm:$0xf] %v233
    %250 = vst [vmem:[#allocation7 + $0x4] sm:$0xf] %v234
    %251 = vst [vmem:[#allocation7 + $0x8] sm:$0xf] %v235
    %252 = vst [vmem:[#allocation7 + $0xc] sm:$0xf] %v236
    %253 = vst [vmem:[#allocation7 + $0x10] sm:$0xf] %v237
    %254 = vst [vmem:[#allocation7 + $0x14] sm:$0xf] %v238
    %255 = vst [vmem:[#allocation7 + $0x18] sm:$0xf] %v239
    %256 = vst [vmem:[#allocation7 + $0x1c] sm:$0xf] %v240
    %257 = vst [vmem:[#allocation7 + $0x20] sm:$0xf] %v241
    %258 = vst [vmem:[#allocation7 + $0x24] sm:$0xf] %v242
    %259 = vst [vmem:[#allocation7 + $0x28] sm:$0xf] %v243
    %260 = vst [vmem:[#allocation7 + $0x2c] sm:$0xf] %v244
    %261 = vst [vmem:[#allocation7 + $0x30] sm:$0xf] %v245
    %262 = vst [vmem:[#allocation7 + $0x34] sm:$0xf] %v246
    %263 = vst [vmem:[#allocation7 + $0x38] sm:$0xf] %v247
    %264 = vst [vmem:[#allocation7 + $0x3c] sm:$0xf] %v248
    %p265 = scmp.eq.s32.totalorder 0, 0
    // Predicated region
    $region18: #{tpu_custom_call.1} parent=1 // pred_check
      %p266 = pneg %p265
    $region19: #{tpu_custom_call.1} parent=1 // pred_check_branch
      %268 = sbr.rel (%p266) target = $region21
    $region20: #{tpu_custom_call.1} parent=1 // pred_region
      %269 = vst [vmem:[#allocation8] sm:$0xff] 0.0
      %270 = vst [vmem:[#allocation10] sm:$0xff] 0.0
    $region21: #{tpu_custom_call.1} parent=1 // pred_fallthru
      _
    %v271 = vld [vmem:[#allocation8] sm:$0xff]
    %v272 = vadd.f32 %v194, %v196
    %v273 = vadd.f32 %v272, %v199
    %v274 = vadd.f32 %v273, %v201
    %v275 = vadd.f32 %v274, %v204
    %v276 = vadd.f32 %v275, %v206
    %v277 = vadd.f32 %v276, %v209
    %v278 = vadd.f32 %v277, %v211
    %v279 = vadd.f32 %v278, %v214
    %v280 = vadd.f32 %v279, %v216
    %v281 = vadd.f32 %v280, %v219
    %v282 = vadd.f32 %v281, %v221
    %v283 = vadd.f32 %v282, %v224
    %v284 = vadd.f32 %v283, %v226
    %v285 = vadd.f32 %v284, %v229
    %v286 = vadd.f32 %v285, %v231
    %v287 = vadd.f32 %v271, %v286
    %288 = vst [vmem:[#allocation8] sm:$0xff] %v287
    %v289 = vld [vmem:[#allocation10] sm:$0xff]
    %v290 = vmul.f32 %v194, %v194
    %v291 = vmul.f32 %v196, %v196
    %v292 = vmul.f32 %v199, %v199
    %v293 = vmul.f32 %v201, %v201
    %v294 = vmul.f32 %v204, %v204
    %v295 = vmul.f32 %v206, %v206
    %v296 = vmul.f32 %v209, %v209
    %v297 = vmul.f32 %v211, %v211
    %v298 = vmul.f32 %v214, %v214
    %v299 = vmul.f32 %v216, %v216
    %v300 = vmul.f32 %v219, %v219
    %v301 = vmul.f32 %v221, %v221
    %v302 = vmul.f32 %v224, %v224
    %v303 = vmul.f32 %v226, %v226
    %v304 = vmul.f32 %v229, %v229
    %v305 = vmul.f32 %v231, %v231
    %v306 = vadd.f32 %v290, %v291
    %v307 = vadd.f32 %v306, %v292
    %v308 = vadd.f32 %v307, %v293
    %v309 = vadd.f32 %v308, %v294
    %v310 = vadd.f32 %v309, %v295
    %v311 = vadd.f32 %v310, %v296
    %v312 = vadd.f32 %v311, %v297
    %v313 = vadd.f32 %v312, %v298
    %v314 = vadd.f32 %v313, %v299
    %v315 = vadd.f32 %v314, %v300
    %v316 = vadd.f32 %v315, %v301
    %v317 = vadd.f32 %v316, %v302
    %v318 = vadd.f32 %v317, %v303
    %v319 = vadd.f32 %v318, %v304
    %v320 = vadd.f32 %v319, %v305
    %v321 = vadd.f32 %v289, %v320
    %322 = vst [vmem:[#allocation10] sm:$0xff] %v321
    // Predicated region
    $region22: #{tpu_custom_call.1} parent=1 // pred_check
      _
    $region23: #{tpu_custom_call.1} parent=1 // pred_check_branch
      %324 = sbr.rel (0) target = $region25
    $region24: #{tpu_custom_call.1} parent=1 // pred_region
      %s325 = sadd.s32 0, 0
      %s326 = smul.u32 16, %s325
      %328 = vsyncadd [#allocation4], 0
      %s329 = smul.addr %s326, 4
      %s330 = scalar_lea.hbm %s2, %s329
      %s331 = sshll.u32 [#allocation7], 4
      %s332 = int_to_ptr.vmem [resolvable:$true] %s331
      %s333 = sshll.u32 %s330, 4
      %s334 = int_to_ptr.hbm [resolvable:$true] %s333
      %339 = dma.vmem_to_hbm [thread:$0]  %s332, 1024, %s334, [#allocation4], 64, 64, 4
    $region25: #{tpu_custom_call.1} parent=1 // pred_fallthru
      _
    // Predicated region
    $region26: #{tpu_custom_call.1} parent=1 // pred_check
      _
    $region27: #{tpu_custom_call.1} parent=1 // pred_check_branch
      %341 = sbr.rel (0) target = $region29
    $region28: #{tpu_custom_call.1} parent=1 // pred_region
      %343 = vsyncadd [#allocation9], 0
      %s345 = sshll.u32 [#allocation8], 4
      %s346 = int_to_ptr.vmem [resolvable:$true] %s345
      %s347 = sshll.u32 %s3, 4
      %s348 = int_to_ptr.hbm [resolvable:$true] %s347
      %350 = dma.vmem_to_hbm [thread:$0]  %s346, 128, %s348, [#allocation9]
    $region29: #{tpu_custom_call.1} parent=1 // pred_fallthru
      _
    // Predicated region
    $region30: #{tpu_custom_call.1} parent=1 // pred_check
      _
    $region31: #{tpu_custom_call.1} parent=1 // pred_check_branch
      %352 = sbr.rel (0) target = $region33
    $region32: #{tpu_custom_call.1} parent=1 // pred_region
      %354 = vsyncadd [#allocation9], 0
      %s356 = sshll.u32 [#allocation10], 4
      %s357 = int_to_ptr.vmem [resolvable:$true] %s356
      %s358 = sshll.u32 %s4, 4
      %s359 = int_to_ptr.hbm [resolvable:$true] %s358
      %361 = dma.vmem_to_hbm [thread:$0]  %s357, 128, %s359, [#allocation9]
    $region33: #{tpu_custom_call.1} parent=1 // pred_fallthru
      _
    // Predicated region
    $region34: #{tpu_custom_call.1} parent=1 // pred_check
      _
    $region35: #{tpu_custom_call.1} parent=1 // pred_check_branch
      %363 = sbr.rel (0) target = $region37
    $region36: #{tpu_custom_call.1} parent=1 // pred_region
      %365 = dma.done [#allocation4], 1024
    $region37: #{tpu_custom_call.1} parent=1 // pred_fallthru
      _
    // Predicated region
    $region38: #{tpu_custom_call.1} parent=1 // pred_check
      _
    $region39: #{tpu_custom_call.1} parent=1 // pred_check_branch
      %367 = sbr.rel (0) target = $region41
    $region40: #{tpu_custom_call.1} parent=1 // pred_region
      %369 = dma.done [#allocation9], 128
    $region41: #{tpu_custom_call.1} parent=1 // pred_fallthru
      _
    // Predicated region
    $region42: #{tpu_custom_call.1} parent=1 // pred_check
      _
    $region43: #{tpu_custom_call.1} parent=1 // pred_check_branch
      %371 = sbr.rel (0) target = $region45
    $region44: #{tpu_custom_call.1} parent=1 // pred_region
      %373 = dma.done [#allocation9], 128
    $region45: #{tpu_custom_call.1} parent=1 // pred_fallthru
      _
    %374 = vsyncpa [#allocation3], 1
    %375 = vsyncpa [#allocation6], 1
    %376 = vsyncpa [#allocation4], 1
    %377 = vsyncpa [#allocation9], 1

</llo_original>
